<compile_context>
chip_gen: v5e
topology: v5e:2x2
jax: 0.10.0
libtpu: 0.0.40
codegen_flags: <defaults>
</compile_context>

<pallas_src>
import jax
import jax.numpy as jnp
from jax import lax
from jax.experimental import pallas as pl
from jax.experimental.pallas import tpu as pltpu

IMAGE_SIZE = 8                      # image_size in the reference module
D_IN = IMAGE_SIZE * IMAGE_SIZE      # 64
H1 = 64
H2 = 16
D_OUT = 1


def _mlp_kernel(x_ref, w1t_ref, b1_ref, w2t_ref, b2_ref, w3_ref, b3_ref, o_ref):
    # x tile arrives in its natural (TB, D_IN) f32 layout; cast + reorient here.
    xb = x_ref[...].astype(jnp.bfloat16)                        # (TB, D_IN) bf16

    # Layer 1: (H1, D_IN) . (TB, D_IN)^T -> (H1, TB). Contracting on the rhs
    # last dim (trans_b on the MXU) puts batch on the lane axis from here on,
    # so the final output stays lane-dense without any wrapper-side transpose.
    h1 = lax.dot_general(w1t_ref[...], xb,
                         dimension_numbers=(((1,), (1,)), ((), ())),
                         preferred_element_type=jnp.float32)    # (H1, TB) f32
    # Fused bias + ReLU + bf16 cast epilogue (one (H1, TB) temporary).
    h1b = jnp.maximum(h1 + b1_ref[...], 0.0).astype(jnp.bfloat16)

    # Layer 2: (H2, H1) @ (H1, TB) -> (H2, TB), bf16 operands, f32 accumulate.
    h2 = jnp.dot(w2t_ref[...], h1b, preferred_element_type=jnp.float32)
    h2 = jnp.maximum(h2 + b2_ref[...], 0.0)

    # Layer 3 (16 -> 1): a 16-wide sublane reduce on the VPU/XLU (an N=1 MXU
    # matmul would use <1% of the systolic array). w3 is (H2, 1) f32.
    z = jnp.sum(h2 * w3_ref[...], axis=0, keepdims=True) + b3_ref[0, 0]  # (1, TB)

    # Exact sigmoid: exp on the EUP; z is only (1, TB) so the divide is free.
    o_ref[...] = 1.0 / (1.0 + jnp.exp(-z))


def discriminator_forward(x, params, *, tb=8192):
    """x: (B, D_IN) float array. params: dict of W1,b1,W2,b2,W3,b3 (f32).

    Returns (B, 1) float32 sigmoid scores.
    """
    B = x.shape[0]

    # Lane-align the batch, clamp the tile for tiny B.
    b128 = pl.cdiv(B, 128) * 128
    tb = min(tb, b128)
    # Keep >= 2 grid steps when the batch allows it (v7x has 2 TensorCores and
    # the "parallel" axis only helps with >= 2 steps to shard).
    if b128 >= 256 and tb > (b128 + 1) // 2:
        tb = pl.cdiv(pl.cdiv(b128, 2), 128) * 128
    b_pad = pl.cdiv(b128, tb) * tb
    grid = (b_pad // tb,)

    # Feed x directly; pad only if needed (single cheap pass, <= tb rows).
    # Padded rows compute garbage in independent lane columns and are sliced off.
    x_in = x.astype(jnp.float32)
    if b_pad != B:
        x_in = jnp.pad(x_in, ((0, b_pad - B), (0, 0)))

    w1t = params["W1"].T.astype(jnp.bfloat16)          # (H1, D_IN)
    w2t = params["W2"].T.astype(jnp.bfloat16)          # (H2, H1)
    b1 = params["b1"].reshape(H1, 1).astype(jnp.float32)
    b2 = params["b2"].reshape(H2, 1).astype(jnp.float32)
    w3 = params["W3"].reshape(H2, 1).astype(jnp.float32)
    b3 = params["b3"].reshape(1, 1).astype(jnp.float32)

    flops = 2 * b_pad * (D_IN * H1 + H1 * H2 + H2 * D_OUT)
    bytes_accessed = (b_pad * D_IN * 4 + b_pad * D_OUT * 4
                      + (w1t.size + w2t.size) * 2
                      + (b1.size + b2.size + w3.size + b3.size) * 4)

    # VMEM budget: double-buffered f32 x tile + in-body temporaries (bf16 x,
    # f32/bf16 h1, f32 h2) + weights/slack. Explicit limit keeps v5e (16 MiB
    # scoped default) from under-buffering and stays inside v7x's 64 MiB.
    vmem_bytes = (2 * tb * D_IN * 4
                  + tb * (D_IN * 2 + H1 * 4 + H1 * 2 + H2 * 4 + 16)
                  + (1 << 20))
    vmem_limit = int(min(max(2 * vmem_bytes, 32 << 20), 48 << 20))

    out_t = pl.pallas_call(
        _mlp_kernel,
        out_shape=jax.ShapeDtypeStruct((D_OUT, b_pad), jnp.float32),
        grid=grid,
        in_specs=[
            pl.BlockSpec((tb, D_IN), lambda i: (i, 0)),      # x tile (pipelined)
            pl.BlockSpec((H1, D_IN), lambda i: (0, 0)),      # W1^T (resident)
            pl.BlockSpec((H1, 1), lambda i: (0, 0)),         # b1
            pl.BlockSpec((H2, H1), lambda i: (0, 0)),        # W2^T
            pl.BlockSpec((H2, 1), lambda i: (0, 0)),         # b2
            pl.BlockSpec((H2, 1), lambda i: (0, 0)),         # w3 (VPU reduce weights)
            pl.BlockSpec(memory_space=pltpu.MemorySpace.SMEM),  # b3 scalar in SMEM
        ],
        out_specs=pl.BlockSpec((D_OUT, tb), lambda i: (0, i)),  # lane-dense (1, TB)
        compiler_params=pltpu.CompilerParams(
            dimension_semantics=("parallel",),
            vmem_limit_bytes=vmem_limit),
        cost_estimate=pl.CostEstimate(
            flops=flops, transcendentals=b_pad, bytes_accessed=bytes_accessed),
    )(x_in, w1t, b1, w2t, b2, w3, b3)

    return out_t[0, :B].reshape(B, D_OUT)


def init_params(key):
    """Deterministic init mimicking PyTorch Linear default (U[-1/sqrt(fan_in), +])."""
    ks = jax.random.split(key, 6)

    def lin(kw, kb, fan_in, fan_out):
        bound = 1.0 / jnp.sqrt(fan_in)
        W = jax.random.uniform(kw, (fan_in, fan_out), jnp.float32, -bound, bound)
        b = jax.random.uniform(kb, (1, fan_out), jnp.float32, -bound, bound)
        return W, b

    W1, b1 = lin(ks[0], ks[1], D_IN, H1)
    W2, b2 = lin(ks[2], ks[3], H1, H2)
    W3, b3 = lin(ks[4], ks[5], H2, D_OUT)
    return {"W1": W1, "b1": b1, "W2": W2, "b2": b2, "W3": W3, "b3": b3}


def _reference(x, p):
    h1 = jnp.maximum(x @ p["W1"] + p["b1"], 0.0)
    h2 = jnp.maximum(h1 @ p["W2"] + p["b2"], 0.0)
    return jax.nn.sigmoid(h2 @ p["W3"] + p["b3"])


if __name__ == "__main__":
    key = jax.random.PRNGKey(0)
    kx, kp = jax.random.split(key)

    B = 200  # exercises the pad-to-128, 2-grid-step, slice-back path
    x = jax.random.normal(kx, (B, D_IN), jnp.float32)
    params = init_params(kp)

    out = discriminator_forward(x, params)
    out = jax.block_until_ready(out)

    ref = _reference(x, params)
    assert out.shape == (B, D_OUT)
    # bf16 matmul operands -> compare with loose tolerance.
    assert jnp.allclose(out, ref, atol=2e-2, rtol=0.0), "mismatch vs reference"

    print("KERNEL_OK")
</pallas_src>

<mosaic_0001>
module attributes {stable_mosaic.version = 11 : i64} {
  func.func @_mlp_kernel(%arg0: i32, %arg1: memref<128x64xf32, #tpu.memory_space<vmem>>, %arg2: memref<64x64xbf16, #tpu.memory_space<vmem>>, %arg3: memref<64x1xf32, #tpu.memory_space<vmem>>, %arg4: memref<16x64xbf16, #tpu.memory_space<vmem>>, %arg5: memref<16x1xf32, #tpu.memory_space<vmem>>, %arg6: memref<16x1xf32, #tpu.memory_space<vmem>>, %arg7: memref<1x1xf32, #tpu.memory_space<smem>>, %arg8: memref<1x128xf32, #tpu.memory_space<vmem>>) attributes {dimension_semantics = [#tpu.dimension_semantics<parallel>], iteration_bounds = array<i64: 2>, scalar_prefetch = 0 : i64, scratch_operands = 0 : i64, tpu.core_type = #tpu.core_type<tc>, window_params = [{transform_indices = @transform_0, window_bounds = array<i64: 128, 64>}, {pipeline_mode = #tpu.pipeline_mode<synchronous>, transform_indices = @transform_1, window_bounds = array<i64: 64, 64>}, {pipeline_mode = #tpu.pipeline_mode<synchronous>, transform_indices = @transform_2, window_bounds = array<i64: 64, 1>}, {pipeline_mode = #tpu.pipeline_mode<synchronous>, transform_indices = @transform_3, window_bounds = array<i64: 16, 64>}, {pipeline_mode = #tpu.pipeline_mode<synchronous>, transform_indices = @transform_4, window_bounds = array<i64: 16, 1>}, {pipeline_mode = #tpu.pipeline_mode<synchronous>, transform_indices = @transform_5, window_bounds = array<i64: 16, 1>}, {transform_indices = @transform_6, window_bounds = array<i64: 1, 1>}, {transform_indices = @transform_7, window_bounds = array<i64: 1, 128>}]} {
    %c0 = arith.constant 0 : index
    %c0_0 = arith.constant 0 : index
    %0 = vector.load %arg1[%c0, %c0_0] : memref<128x64xf32, #tpu.memory_space<vmem>>, vector<128x64xf32>
    %1 = arith.truncf %0 : vector<128x64xf32> to vector<128x64xbf16>
    %c0_1 = arith.constant 0 : index
    %c0_2 = arith.constant 0 : index
    %2 = vector.load %arg2[%c0_1, %c0_2] : memref<64x64xbf16, #tpu.memory_space<vmem>>, vector<64x64xbf16>
    %cst = arith.constant dense<0.000000e+00> : vector<64x128xf32>
    %3 = tpu.matmul %2, %1, %cst {dimension_numbers = #tpu.dot_dimension_numbers<[1], [1], [0], [0], [0, 0, 1, 0], [], []>} : vector<64x64xbf16>, vector<128x64xbf16>, vector<64x128xf32> -> vector<64x128xf32>
    %c0_3 = arith.constant 0 : index
    %c0_4 = arith.constant 0 : index
    %4 = vector.load %arg3[%c0_3, %c0_4] : memref<64x1xf32, #tpu.memory_space<vmem>>, vector<64x1xf32>
    %5 = vector.broadcast %4 : vector<64x1xf32> to vector<64x128xf32>
    %6 = arith.addf %3, %5 : vector<64x128xf32>
    %cst_5 = arith.constant 0.000000e+00 : f32
    %7 = vector.broadcast %cst_5 : f32 to vector<64x128xf32>
    %8 = arith.maximumf %6, %7 : vector<64x128xf32>
    %9 = arith.truncf %8 : vector<64x128xf32> to vector<64x128xbf16>
    %c0_6 = arith.constant 0 : index
    %c0_7 = arith.constant 0 : index
    %10 = vector.load %arg4[%c0_6, %c0_7] : memref<16x64xbf16, #tpu.memory_space<vmem>>, vector<16x64xbf16>
    %cst_8 = arith.constant dense<0.000000e+00> : vector<16x128xf32>
    %11 = tpu.matmul %10, %9, %cst_8 {dimension_numbers = #tpu.dot_dimension_numbers<[1], [0], [0], [1], [0, 0, 1, 1], [], []>} : vector<16x64xbf16>, vector<64x128xbf16>, vector<16x128xf32> -> vector<16x128xf32>
    %c0_9 = arith.constant 0 : index
    %c0_10 = arith.constant 0 : index
    %12 = vector.load %arg5[%c0_9, %c0_10] : memref<16x1xf32, #tpu.memory_space<vmem>>, vector<16x1xf32>
    %13 = vector.broadcast %12 : vector<16x1xf32> to vector<16x128xf32>
    %14 = arith.addf %11, %13 : vector<16x128xf32>
    %cst_11 = arith.constant 0.000000e+00 : f32
    %15 = vector.broadcast %cst_11 : f32 to vector<16x128xf32>
    %16 = arith.maximumf %14, %15 : vector<16x128xf32>
    %c0_12 = arith.constant 0 : index
    %c0_13 = arith.constant 0 : index
    %17 = vector.load %arg6[%c0_12, %c0_13] : memref<16x1xf32, #tpu.memory_space<vmem>>, vector<16x1xf32>
    %18 = vector.broadcast %17 : vector<16x1xf32> to vector<16x128xf32>
    %19 = arith.mulf %16, %18 : vector<16x128xf32>
    %cst_14 = arith.constant dense<0.000000e+00> : vector<128xf32>
    %20 = vector.multi_reduction <add>, %19, %cst_14 [0] : vector<16x128xf32> to vector<128xf32>
    %21 = vector.shape_cast %20 : vector<128xf32> to vector<1x128xf32>
    %c0_15 = arith.constant 0 : index
    %c0_16 = arith.constant 0 : index
    %22 = memref.load %arg7[%c0_15, %c0_16] : memref<1x1xf32, #tpu.memory_space<smem>>
    %23 = vector.broadcast %22 : f32 to vector<1x128xf32>
    %24 = arith.addf %21, %23 : vector<1x128xf32>
    %cst_17 = arith.constant 0.000000e+00 : f32
    %25 = vector.broadcast %cst_17 : f32 to vector<1x128xf32>
    %26 = arith.subf %25, %24 : vector<1x128xf32>
    %27 = math.exp %26 : vector<1x128xf32>
    %cst_18 = arith.constant 1.000000e+00 : f32
    %28 = vector.broadcast %cst_18 : f32 to vector<1x128xf32>
    %29 = arith.addf %28, %27 : vector<1x128xf32>
    %cst_19 = arith.constant 1.000000e+00 : f32
    %30 = vector.broadcast %cst_19 : f32 to vector<1x128xf32>
    %31 = arith.divf %30, %29 : vector<1x128xf32>
    %c0_20 = arith.constant 0 : index
    %c0_21 = arith.constant 0 : index
    %32 = vector.load %arg8[%c0_20, %c0_21] : memref<1x128xf32, #tpu.memory_space<vmem>>, vector<1x128xf32>
    tpu.vector_store %arg8[%c0_20, %c0_21], %31 {strides = array<i32>} : memref<1x128xf32, #tpu.memory_space<vmem>>, vector<1x128xf32>,
    return
  }
  func.func @transform_0(%arg0: i32) -> (i32, i32) {
    %c0_i32 = arith.constant 0 : i32
    %c0_i32_0 = arith.constant 0 : i32
    return %arg0, %c0_i32 : i32, i32
  }
  func.func @transform_1(%arg0: i32) -> (i32, i32) {
    %c0_i32 = arith.constant 0 : i32
    %c0_i32_0 = arith.constant 0 : i32
    %c0_i32_1 = arith.constant 0 : i32
    return %c0_i32, %c0_i32_0 : i32, i32
  }
  func.func @transform_2(%arg0: i32) -> (i32, i32) {
    %c0_i32 = arith.constant 0 : i32
    %c0_i32_0 = arith.constant 0 : i32
    %c0_i32_1 = arith.constant 0 : i32
    return %c0_i32, %c0_i32_0 : i32, i32
  }
  func.func @transform_3(%arg0: i32) -> (i32, i32) {
    %c0_i32 = arith.constant 0 : i32
    %c0_i32_0 = arith.constant 0 : i32
    %c0_i32_1 = arith.constant 0 : i32
    return %c0_i32, %c0_i32_0 : i32, i32
  }
  func.func @transform_4(%arg0: i32) -> (i32, i32) {
    %c0_i32 = arith.constant 0 : i32
    %c0_i32_0 = arith.constant 0 : i32
    %c0_i32_1 = arith.constant 0 : i32
    return %c0_i32, %c0_i32_0 : i32, i32
  }
  func.func @transform_5(%arg0: i32) -> (i32, i32) {
    %c0_i32 = arith.constant 0 : i32
    %c0_i32_0 = arith.constant 0 : i32
    %c0_i32_1 = arith.constant 0 : i32
    return %c0_i32, %c0_i32_0 : i32, i32
  }
  func.func @transform_6(%arg0: i32) -> (i32, i32) {
    %c0_i32 = arith.constant 0 : i32
    %c0_i32_0 = arith.constant 0 : i32
    %c0_i32_1 = arith.constant 0 : i32
    return %c0_i32, %c0_i32_0 : i32, i32
  }
  func.func @transform_7(%arg0: i32) -> (i32, i32) {
    %c0_i32 = arith.constant 0 : i32
    %c0_i32_0 = arith.constant 0 : i32
    return %c0_i32, %arg0 : i32, i32
  }
}

</mosaic_0001>

<llo_original>
// kernel: tpu_custom_call.1
$region0: #{tpu_custom_call.1}
  #allocation0 [shape = 'u32[]', space=smem, size = 0x4, offset = 0x4, fixed_abs, tag = 'smem constant byte address 0x4 - core index']
  #allocation1 [shape = 'u32[72,128]{1,0:T(1,128)}', space=vmem, size = 0x9000, scoped, tag = 'internal scratch']
  #allocation2 [shape = 'f32[1,1]{1,0:T(1,128)S(6)}', space=smem, size = 0x200, scoped, tag = 'scoped memory for tpu_custom_call.1']
  %s0 = inlined_call_operand.vmem [shape: f32[256,64], index: 0, kind: input, shape index: {}]
  %s1 = inlined_call_operand.vmem [shape: bf16[64,64], index: 1, kind: input, shape index: {}]
  %s2 = inlined_call_operand.vmem [shape: f32[64,1], index: 2, kind: input, shape index: {}]
  %s3 = inlined_call_operand.vmem [shape: bf16[16,64], index: 3, kind: input, shape index: {}]
  %s4 = inlined_call_operand.vmem [shape: f32[16,1], index: 4, kind: input, shape index: {}]
  %s5 = inlined_call_operand.vmem [shape: f32[16,1], index: 5, kind: input, shape index: {}]
  %s6 = inlined_call_operand.<no memory space> [shape: f32[1,1], index: 6, kind: input, shape index: {}]
  %s7 = inlined_call_operand.hbm [shape: f32[1,256], index: 7, kind: output, shape index: {}]
  %s8 = sld [smem:[#allocation0]]
  $region61: #{tpu_custom_call.1} parent=0
    _
  %s10 = ssub.s32 1, %s8
  %s11 = scalar_select 0, %s10, %s8
  %12 = sst [smem:[#allocation2]] %s6
  $region1: #{tpu_custom_call.1} parent=0
    #allocation3 [shape = 'u8[1024]{0}', space=vmem, size = 0x400, scoped, tag = 'output window, operand 0']
    #allocation4 [shape = 's32[2]{0}', space=sflag, size = 0x8, scoped, tag = 'scoped memory for tpu_custom_call.1']
    %13 = vsyncpa [#allocation4], 0
    %s14 = scalar_lea.sflag [#allocation4], 1
    %15 = vsyncpa %s14, 0
    loop: start=0, step=1, limit=4
    $region2: #{tpu_custom_call.1} parent=1 // loop_pre_header
      _
    $region3: #{tpu_custom_call.1} parent=1 // loop_header
      %s17 = sphi 0, %s21
      %p18 = scmp.ge.s32.totalorder %s17, 4
      %s27 = sphi 0, %s29
      %s30 = sphi 0, %s27
      %s31 = sphi 0, %s30
      %s47 = sphi 0, %s31
      %s51 = sphi 0, %s51
      %s53 = sphi 0, %s51
      %s54 = sphi 0, %s53
      %s68 = sphi 0, %s54
      %s72 = sphi 0, %s72
      %s74 = sphi 0, %s72
      %s75 = sphi 0, %s74
      %s89 = sphi 0, %s75
      %s93 = sphi 0, %s93
      %s95 = sphi 0, %s93
      %s96 = sphi 0, %s95
      %s110 = sphi 0, %s96
      %s114 = sphi 0, %s114
      %s116 = sphi 0, %s114
      %s117 = sphi 0, %s116
      %s131 = sphi 0, %s117
      %s135 = sphi 0, %s135
      %s137 = sphi 0, %s135
      %s138 = sphi 0, %s137
      %s152 = sphi 0, %s138
      %s156 = sphi 0, %s156
      %s158 = sphi 0, %s156
      %s159 = sphi 0, %s158
      %s173 = sphi 0, %s159
      %s179 = sphi 0, %s181
      %s182 = sphi 0, %s179
      %s183 = sphi 0, %s182
      %s199 = sphi 0, %s183
    $region4: #{tpu_custom_call.1} parent=1 // loop_header_branch
      %20 = sbr.rel (%p18) target = $region8
    $region5: #{tpu_custom_call.1} parent=1 // loop_body
      %s22 = ssub.s32 %s17, 1
      %s23 = ssub.s32 %s17, 2
      %s24 = sadd.s32 %s17, 1
      %s25 = ssub.s32 %s17, %s24
      %p26 = scmp.eq.s32.totalorder %s25, 0
      %s28 = sadd.s32 %s27, 1
      %s29 = scalar_select %p26, %s27, %s28
      %p32 = pneg %p26
      %p33 = scmp.eq.s32.totalorder %s17, 1
      %p34 = por %p32, %p33
      %p35 = scmp.ne.s32.totalorder %s27, %s30
      %p36 = scmp.eq.s32.totalorder %s17, 0
      %p37 = por %p35, %p36
      %p38 = scmp.ne.s32.totalorder %s27, %s30
      %p39 = scmp.eq.s32.totalorder %s22, 1
      %p40 = por %p38, %p39
      %p41 = scmp.ne.s32.totalorder %s30, %s31
      %p42 = scmp.eq.s32.totalorder %s22, 0
      %p43 = por %p41, %p42
      %p44 = scmp.ne.s32.totalorder %s30, %s31
      %p45 = scmp.eq.s32.totalorder %s23, 1
      %p46 = por %p44, %p45
      %p48 = scmp.ne.s32.totalorder %s31, %s47
      %p49 = scmp.eq.s32.totalorder %s23, 0
      %p50 = por %p48, %p49
      %s52 = sadd.s32 %s51, 1
      %p55 = scmp.eq.s32.totalorder %s17, 1
      %p56 = scmp.ne.s32.totalorder %s51, %s53
      %p57 = scmp.eq.s32.totalorder %s17, 0
      %p58 = por %p56, %p57
      %p59 = scmp.ne.s32.totalorder %s51, %s53
      %p60 = scmp.eq.s32.totalorder %s22, 1
      %p61 = por %p59, %p60
      %p62 = scmp.ne.s32.totalorder %s53, %s54
      %p63 = scmp.eq.s32.totalorder %s22, 0
      %p64 = por %p62, %p63
      %p65 = scmp.ne.s32.totalorder %s53, %s54
      %p66 = scmp.eq.s32.totalorder %s23, 1
      %p67 = por %p65, %p66
      %p69 = scmp.ne.s32.totalorder %s54, %s68
      %p70 = scmp.eq.s32.totalorder %s23, 0
      %p71 = por %p69, %p70
      %s73 = sadd.s32 %s72, 1
      %p76 = scmp.eq.s32.totalorder %s17, 1
      %p77 = scmp.ne.s32.totalorder %s72, %s74
      %p78 = scmp.eq.s32.totalorder %s17, 0
      %p79 = por %p77, %p78
      %p80 = scmp.ne.s32.totalorder %s72, %s74
      %p81 = scmp.eq.s32.totalorder %s22, 1
      %p82 = por %p80, %p81
      %p83 = scmp.ne.s32.totalorder %s74, %s75
      %p84 = scmp.eq.s32.totalorder %s22, 0
      %p85 = por %p83, %p84
      %p86 = scmp.ne.s32.totalorder %s74, %s75
      %p87 = scmp.eq.s32.totalorder %s23, 1
      %p88 = por %p86, %p87
      %p90 = scmp.ne.s32.totalorder %s75, %s89
      %p91 = scmp.eq.s32.totalorder %s23, 0
      %p92 = por %p90, %p91
      %s94 = sadd.s32 %s93, 1
      %p97 = scmp.eq.s32.totalorder %s17, 1
      %p98 = scmp.ne.s32.totalorder %s93, %s95
      %p99 = scmp.eq.s32.totalorder %s17, 0
      %p100 = por %p98, %p99
      %p101 = scmp.ne.s32.totalorder %s93, %s95
      %p102 = scmp.eq.s32.totalorder %s22, 1
      %p103 = por %p101, %p102
      %p104 = scmp.ne.s32.totalorder %s95, %s96
      %p105 = scmp.eq.s32.totalorder %s22, 0
      %p106 = por %p104, %p105
      %p107 = scmp.ne.s32.totalorder %s95, %s96
      %p108 = scmp.eq.s32.totalorder %s23, 1
      %p109 = por %p107, %p108
      %p111 = scmp.ne.s32.totalorder %s96, %s110
      %p112 = scmp.eq.s32.totalorder %s23, 0
      %p113 = por %p111, %p112
      %s115 = sadd.s32 %s114, 1
      %p118 = scmp.eq.s32.totalorder %s17, 1
      %p119 = scmp.ne.s32.totalorder %s114, %s116
      %p120 = scmp.eq.s32.totalorder %s17, 0
      %p121 = por %p119, %p120
      %p122 = scmp.ne.s32.totalorder %s114, %s116
      %p123 = scmp.eq.s32.totalorder %s22, 1
      %p124 = por %p122, %p123
      %p125 = scmp.ne.s32.totalorder %s116, %s117
      %p126 = scmp.eq.s32.totalorder %s22, 0
      %p127 = por %p125, %p126
      %p128 = scmp.ne.s32.totalorder %s116, %s117
      %p129 = scmp.eq.s32.totalorder %s23, 1
      %p130 = por %p128, %p129
      %p132 = scmp.ne.s32.totalorder %s117, %s131
      %p133 = scmp.eq.s32.totalorder %s23, 0
      %p134 = por %p132, %p133
      %s136 = sadd.s32 %s135, 1
      %p139 = scmp.eq.s32.totalorder %s17, 1
      %p140 = scmp.ne.s32.totalorder %s135, %s137
      %p141 = scmp.eq.s32.totalorder %s17, 0
      %p142 = por %p140, %p141
      %p143 = scmp.ne.s32.totalorder %s135, %s137
      %p144 = scmp.eq.s32.totalorder %s22, 1
      %p145 = por %p143, %p144
      %p146 = scmp.ne.s32.totalorder %s137, %s138
      %p147 = scmp.eq.s32.totalorder %s22, 0
      %p148 = por %p146, %p147
      %p149 = scmp.ne.s32.totalorder %s137, %s138
      %p150 = scmp.eq.s32.totalorder %s23, 1
      %p151 = por %p149, %p150
      %p153 = scmp.ne.s32.totalorder %s138, %s152
      %p154 = scmp.eq.s32.totalorder %s23, 0
      %p155 = por %p153, %p154
      %s157 = sadd.s32 %s156, 1
      %p160 = scmp.eq.s32.totalorder %s17, 1
      %p161 = scmp.ne.s32.totalorder %s156, %s158
      %p162 = scmp.eq.s32.totalorder %s17, 0
      %p163 = por %p161, %p162
      %p164 = scmp.ne.s32.totalorder %s156, %s158
      %p165 = scmp.eq.s32.totalorder %s22, 1
      %p166 = por %p164, %p165
      %p167 = scmp.ne.s32.totalorder %s158, %s159
      %p168 = scmp.eq.s32.totalorder %s22, 0
      %p169 = por %p167, %p168
      %p170 = scmp.ne.s32.totalorder %s158, %s159
      %p171 = scmp.eq.s32.totalorder %s23, 1
      %p172 = por %p170, %p171
      %p174 = scmp.ne.s32.totalorder %s159, %s173
      %p175 = scmp.eq.s32.totalorder %s23, 0
      %p176 = por %p174, %p175
      %s177 = ssub.s32 %s17, %s24
      %p178 = scmp.eq.s32.totalorder %s177, 0
      %s180 = sadd.s32 %s179, 1
      %s181 = scalar_select %p178, %s179, %s180
      %p184 = pneg %p178
      %p185 = scmp.eq.s32.totalorder %s17, 1
      %p186 = por %p184, %p185
      %p187 = scmp.ne.s32.totalorder %s179, %s182
      %p188 = scmp.eq.s32.totalorder %s17, 0
      %p189 = por %p187, %p188
      %p190 = scmp.ne.s32.totalorder %s179, %s182
      %p191 = scmp.eq.s32.totalorder %s22, 1
      %p192 = por %p190, %p191
      %p193 = scmp.ne.s32.totalorder %s182, %s183
      %p194 = scmp.eq.s32.totalorder %s22, 0
      %p195 = por %p193, %p194
      %p196 = scmp.ne.s32.totalorder %s182, %s183
      %p197 = scmp.eq.s32.totalorder %s23, 1
      %p198 = por %p196, %p197
      %p200 = scmp.ne.s32.totalorder %s183, %s199
      %p201 = scmp.eq.s32.totalorder %s23, 0
      %p202 = por %p200, %p201
      %p203 = scmp.le.s32.totalorder 1, %s17
      %p204 = scmp.lt.s32.totalorder %s17, 3
      %p205 = pnand %p203, %p204
      %p206 = pneg %p205
      // Predicated region
      $region9: #{tpu_custom_call.1} parent=5 // pred_check
        _
      $region10: #{tpu_custom_call.1} parent=5 // pred_check_branch
        %208 = sbr.rel (%p205) target = $region12
      $region11: #{tpu_custom_call.1} parent=5 // pred_region
        %s209 = ssub.s32 %s17, 1
        // Predicated region
        $region13: #{tpu_custom_call.1} parent=11 // pred_check
          %p210 = pneg %p64
        $region14: #{tpu_custom_call.1} parent=11 // pred_check_branch
          %212 = sbr.rel (%p210) target = $region16
        $region15: #{tpu_custom_call.1} parent=11 // pred_region
          _
        $region16: #{tpu_custom_call.1} parent=11 // pred_fallthru
          _
        // Predicated region
        $region17: #{tpu_custom_call.1} parent=11 // pred_check
          %p213 = pneg %p85
        $region18: #{tpu_custom_call.1} parent=11 // pred_check_branch
          %215 = sbr.rel (%p213) target = $region20
        $region19: #{tpu_custom_call.1} parent=11 // pred_region
          _
        $region20: #{tpu_custom_call.1} parent=11 // pred_fallthru
          _
        // Predicated region
        $region21: #{tpu_custom_call.1} parent=11 // pred_check
          %p216 = pneg %p106
        $region22: #{tpu_custom_call.1} parent=11 // pred_check_branch
          %218 = sbr.rel (%p216) target = $region24
        $region23: #{tpu_custom_call.1} parent=11 // pred_region
          _
        $region24: #{tpu_custom_call.1} parent=11 // pred_fallthru
          _
        // Predicated region
        $region25: #{tpu_custom_call.1} parent=11 // pred_check
          %p219 = pneg %p127
        $region26: #{tpu_custom_call.1} parent=11 // pred_check_branch
          %221 = sbr.rel (%p219) target = $region28
        $region27: #{tpu_custom_call.1} parent=11 // pred_region
          _
        $region28: #{tpu_custom_call.1} parent=11 // pred_fallthru
          _
        // Predicated region
        $region29: #{tpu_custom_call.1} parent=11 // pred_check
          %p222 = pneg %p148
        $region30: #{tpu_custom_call.1} parent=11 // pred_check_branch
          %224 = sbr.rel (%p222) target = $region32
        $region31: #{tpu_custom_call.1} parent=11 // pred_region
          _
        $region32: #{tpu_custom_call.1} parent=11 // pred_fallthru
          _
        // Predicated region
        $region33: #{tpu_custom_call.1} parent=11 // pred_check
          %p225 = pneg %p169
        $region34: #{tpu_custom_call.1} parent=11 // pred_check_branch
          %227 = sbr.rel (%p225) target = $region36
        $region35: #{tpu_custom_call.1} parent=11 // pred_region
          _
        $region36: #{tpu_custom_call.1} parent=11 // pred_fallthru
          _
      $region12: #{tpu_custom_call.1} parent=5 // pred_fallthru
        _
      %p228 = scmp.lt.s32.totalorder %s17, 2
      // Predicated region
      $region37: #{tpu_custom_call.1} parent=5 // pred_check
        %p229 = pneg %p228
      $region38: #{tpu_custom_call.1} parent=5 // pred_check_branch
        %231 = sbr.rel (%p229) target = $region40
      $region39: #{tpu_custom_call.1} parent=5 // pred_region
        // Predicated region
        $region41: #{tpu_custom_call.1} parent=39 // pred_check
          %p232 = pneg %p37
        $region42: #{tpu_custom_call.1} parent=39 // pred_check_branch
          %234 = sbr.rel (%p232) target = $region44
        $region43: #{tpu_custom_call.1} parent=39 // pred_region
          %s235 = smul.u32 16, %s17
          %p236 = scmp.lt.s32.totalorder %s235, 31
          %s237 = scalar_select %p236, %s235, 31
          %s238 = smul.addr %s237, 8
          %s239 = scalar_lea.vmem %s0, %s238
          %s240 = smul.u32 16, %s17
        $region44: #{tpu_custom_call.1} parent=39 // pred_fallthru
          _
      $region40: #{tpu_custom_call.1} parent=5 // pred_fallthru
        _
      %p241 = scmp.le.s32.totalorder 1, %s17
      %p242 = scmp.lt.s32.totalorder %s17, 3
      %p243 = pnand %p241, %p242
      %p244 = pneg %p243
      // Predicated region
      $region45: #{tpu_custom_call.1} parent=5 // pred_check
        _
      $region46: #{tpu_custom_call.1} parent=5 // pred_check_branch
        %246 = sbr.rel (%p243) target = $region48
      $region47: #{tpu_custom_call.1} parent=5 // pred_region
        %s247 = ssub.s32 %s17, 1
        %s248 = smul.u32 16, %s22
        %p249 = scmp.lt.s32.totalorder %s248, 31
        %s250 = scalar_select %p249, %s248, 31
        %s251 = smul.addr %s250, 8
        %s252 = scalar_lea.vmem %s0, %s251
        %p253 = pneg %p43
        %p254 = pneg %p40
        %p255 = pneg %p64
        %p256 = pneg %p61
        %p257 = pneg %p85
        %p258 = pneg %p82
        %p259 = pneg %p106
        %p260 = pneg %p103
        %p261 = pneg %p127
        %p262 = pneg %p124
        %p263 = pneg %p148
        %p264 = pneg %p145
        %p265 = pneg %p169
        %p266 = pneg %p166
        %p267 = pneg %p195
        %p268 = pneg %p192
        %s269 = sand.u32 %s182, 1
        %s270 = scalar_lea.sflag [#allocation4], %s269
        %s271 = sand.u32 %s182, 1
        %s272 = scalar_lea.vmem [#allocation3], %s271
        %s273 = smul.u32 16, %s22
        %p274 = scmp.lt.s32.totalorder %s273, 31
        %s275 = scalar_select %p274, %s273, 31
        %s276 = smul.addr %s275, 8
        %s277 = scalar_lea.vmem %s0, %s276
        %s278 = smul.u32 16, %s22
        %v280 = vld [vmem:[%s277] sm:$0xff]
        %v281 = vld [vmem:[%s277 + $0x8] sm:$0xff]
        %v282 = vld [vmem:[%s277 + $0x10] sm:$0xff]
        %v283 = vld [vmem:[%s277 + $0x18] sm:$0xff]
        %v284 = vld [vmem:[%s277 + $0x20] sm:$0xff]
        %v285 = vld [vmem:[%s277 + $0x28] sm:$0xff]
        %v286 = vld [vmem:[%s277 + $0x30] sm:$0xff]
        %v287 = vld [vmem:[%s277 + $0x38] sm:$0xff]
        %v288 = vld [vmem:[%s277 + $0x40] sm:$0xff]
        %v289 = vld [vmem:[%s277 + $0x48] sm:$0xff]
        %v290 = vld [vmem:[%s277 + $0x50] sm:$0xff]
        %v291 = vld [vmem:[%s277 + $0x58] sm:$0xff]
        %v292 = vld [vmem:[%s277 + $0x60] sm:$0xff]
        %v293 = vld [vmem:[%s277 + $0x68] sm:$0xff]
        %v294 = vld [vmem:[%s277 + $0x70] sm:$0xff]
        %v295 = vld [vmem:[%s277 + $0x78] sm:$0xff]
        %v296 = vpack.c.bf16 %v281, %v280
        %v297 = vpack.c.bf16 %v283, %v282
        %v298 = vpack.c.bf16 %v285, %v284
        %v299 = vpack.c.bf16 %v287, %v286
        %v300 = vpack.c.bf16 %v289, %v288
        %v301 = vpack.c.bf16 %v291, %v290
        %v302 = vpack.c.bf16 %v293, %v292
        %v303 = vpack.c.bf16 %v295, %v294
        %v304 = vld [vmem:[%s1] sm:$0xf]
        %v305 = vld [vmem:[%s1 + $0x4] sm:$0xf]
        %v306 = vld [vmem:[%s1 + $0x8] sm:$0xf]
        %v307 = vld [vmem:[%s1 + $0xc] sm:$0xf]
        %v308 = vld [vmem:[%s1 + $0x10] sm:$0xf]
        %v309 = vld [vmem:[%s1 + $0x14] sm:$0xf]
        %v310 = vld [vmem:[%s1 + $0x18] sm:$0xf]
        %v311 = vld [vmem:[%s1 + $0x1c] sm:$0xf]
        %v312 = vld [vmem:[%s2] sm:$0xff]
        %v313 = vld [vmem:[%s2 + $0x8] sm:$0xff]
        %v314 = vld [vmem:[%s2 + $0x10] sm:$0xff]
        %v315 = vld [vmem:[%s2 + $0x18] sm:$0xff]
        %v316 = vld [vmem:[%s2 + $0x20] sm:$0xff]
        %v317 = vld [vmem:[%s2 + $0x28] sm:$0xff]
        %v318 = vld [vmem:[%s2 + $0x30] sm:$0xff]
        %v319 = vld [vmem:[%s2 + $0x38] sm:$0xff]
        %321 = vset.pattern.permute.xlu0 0
        %322 = vperm.xlu0 %321, %v312
        %v323 = vpop.permute.xlu0 %322
        %326 = vset.pattern.permute.xlu0 0
        %327 = vperm.xlu0 %326, %v313
        %v328 = vpop.permute.xlu0 %327
        %331 = vset.pattern.permute.xlu0 0
        %332 = vperm.xlu0 %331, %v314
        %v333 = vpop.permute.xlu0 %332
        %336 = vset.pattern.permute.xlu0 0
        %337 = vperm.xlu0 %336, %v315
        %v338 = vpop.permute.xlu0 %337
        %341 = vset.pattern.permute.xlu0 0
        %342 = vperm.xlu0 %341, %v316
        %v343 = vpop.permute.xlu0 %342
        %346 = vset.pattern.permute.xlu0 0
        %347 = vperm.xlu0 %346, %v317
        %v348 = vpop.permute.xlu0 %347
        %351 = vset.pattern.permute.xlu0 0
        %352 = vperm.xlu0 %351, %v318
        %v353 = vpop.permute.xlu0 %352
        %356 = vset.pattern.permute.xlu0 0
        %357 = vperm.xlu0 %356, %v319
        %v358 = vpop.permute.xlu0 %357
        %v368 = vunpack.c.l.b16 %v304
        %v369 = vunpack.c.l.b16 %v305
        %v370 = vunpack.c.l.b16 %v306
        %v371 = vunpack.c.l.b16 %v307
        %v372 = vunpack.c.l.b16 %v308
        %v373 = vunpack.c.l.b16 %v309
        %v374 = vunpack.c.l.b16 %v310
        %v375 = vunpack.c.l.b16 %v311
        %v376 = vpack.c.b16 %v369, %v368
        %v377 = vpack.c.b16 %v371, %v370
        %v378 = vpack.c.b16 %v373, %v372
        %v379 = vpack.c.b16 %v375, %v374
        %vm380 = vcmask 523264
        %v382 = vsel %vm380, %v376, 0
        %v385 = vsel %vm380, %v377, 0
        %v388 = vsel %vm380, %v378, 0
        %v391 = vsel %vm380, %v379, 0
        %v394 = vsel %vm380, %v296, 0
        %v397 = vsel %vm380, %v297, 0
        %v400 = vsel %vm380, %v298, 0
        %v403 = vsel %vm380, %v299, 0
        %v406 = vsel %vm380, %v300, 0
        %v409 = vsel %vm380, %v301, 0
        %v412 = vsel %vm380, %v302, 0
        %v415 = vsel %vm380, %v303, 0
        %417 = vmatpush.bf16.xpose.msra.mxu0 %v415
        %418 = vmatpush.bf16.xpose.msra.mxu0 %v412
        %419 = vmatpush.bf16.xpose.msra.mxu0 %v409
        %420 = vmatpush.bf16.xpose.msra.mxu0 %v406
        %421 = vmatpush.bf16.xpose.msra.mxu0 %v403
        %422 = vmatpush.bf16.xpose.msra.mxu0 %v400
        %423 = vmatpush.bf16.xpose.msra.mxu0 %v397
        %424 = vmatpush.bf16.xpose.msra.mxu0 %v394
        %425 = vmatmul.bf16.gmra.mxu0 %v382
        %v426 = vpop.f32.mrf.mxu0
        %v427 = vadd.f32 %v323, %v426
        %v428 = vpop.f32.mrf.mxu0
        %v429 = vadd.f32 %v328, %v428
        %430 = vmatmul.bf16.gmra.mxu0 %v385
        %v431 = vpop.f32.mrf.mxu0
        %v432 = vadd.f32 %v333, %v431
        %v433 = vpop.f32.mrf.mxu0
        %v434 = vadd.f32 %v338, %v433
        %435 = vmatmul.bf16.gmra.mxu0 %v388
        %v436 = vpop.f32.mrf.mxu0
        %v437 = vadd.f32 %v343, %v436
        %v438 = vpop.f32.mrf.mxu0
        %v439 = vadd.f32 %v348, %v438
        %440 = vmatmul.bf16.gmra.mxu0 %v391
        %v441 = vpop.f32.mrf.mxu0
        %v442 = vadd.f32 %v353, %v441
        %v443 = vpop.f32.mrf.mxu0
        %v444 = vadd.f32 %v358, %v443
        %445 = vdwg.mxu0
        %v446 = vmax.f32 %v427, 0.0
        %v447 = vmax.f32 %v429, 0.0
        %v448 = vmax.f32 %v432, 0.0
        %v449 = vmax.f32 %v434, 0.0
        %v450 = vmax.f32 %v437, 0.0
        %v451 = vmax.f32 %v439, 0.0
        %v452 = vmax.f32 %v442, 0.0
        %v453 = vmax.f32 %v444, 0.0
        %v454 = vpack.c.bf16 %v447, %v446
        %v455 = vpack.c.bf16 %v449, %v448
        %v456 = vpack.c.bf16 %v451, %v450
        %v457 = vpack.c.bf16 %v453, %v452
        %v458 = vld [vmem:[%s3] sm:$0xf]
        %v459 = vld [vmem:[%s3 + $0x4] sm:$0xf]
        %v460 = vld [vmem:[%s4] sm:$0xff]
        %v461 = vld [vmem:[%s4 + $0x8] sm:$0xff]
        %463 = vset.pattern.permute.xlu0 0
        %464 = vperm.xlu0 %463, %v460
        %v465 = vpop.permute.xlu0 %464
        %468 = vset.pattern.permute.xlu0 0
        %469 = vperm.xlu0 %468, %v461
        %v470 = vpop.permute.xlu0 %469
        %v474 = vunpack.c.l.b16 %v458
        %v475 = vunpack.c.l.b16 %v459
        %v476 = vpack.c.b16 %v475, %v474
        %v478 = vsel %vm380, %v476, 0
        %480 = vmatpush.bf16.msra.mxu0 0
        %481 = vmatpush.bf16.msra.mxu0 0
        %482 = vmatpush.bf16.msra.mxu0 0
        %483 = vmatpush.bf16.msra.mxu0 0
        %484 = vmatpush.bf16.msra.mxu0 %v457
        %485 = vmatpush.bf16.msra.mxu0 %v456
        %486 = vmatpush.bf16.msra.mxu0 %v455
        %487 = vmatpush.bf16.msra.mxu0 %v454
        %488 = vmatmul.bf16.gmra.mxu0 %v478
        %v489 = vpop.f32.mrf.mxu0
        %v490 = vadd.f32 %v465, %v489
        %v491 = vpop.f32.mrf.mxu0
        %v492 = vadd.f32 %v470, %v491
        %493 = vdwg.mxu0
        %v494 = vmax.f32 %v490, 0.0
        %v495 = vmax.f32 %v492, 0.0
        %v496 = vld [vmem:[%s5] sm:$0xff]
        %v497 = vld [vmem:[%s5 + $0x8] sm:$0xff]
        %499 = vset.pattern.permute.xlu0 0
        %500 = vperm.xlu0 %499, %v496
        %v501 = vpop.permute.xlu0 %500
        %504 = vset.pattern.permute.xlu0 0
        %505 = vperm.xlu0 %504, %v497
        %v506 = vpop.permute.xlu0 %505
        %v508 = vmul.f32 %v494, %v501
        %v509 = vmul.f32 %v495, %v506
        %v510 = vadd.f32 %v508, %v509
        %v511 = vrot.slane %v510, 4
        %v512 = vadd.f32 %v510, %v511
        %v513 = vrot.slane %v512, 2
        %v514 = vadd.f32 %v512, %v513
        %v515 = vrot.slane %v514, 1
        %v516 = vadd.f32 %v514, %v515
        %s517 = sld [smem:[#allocation2]]
        %v518 = vstv %s517
        %v519 = vadd.f32 %v516, %v518
        %v520 = vsub.f32 0.0, %v519
        %v521 = vmul.f32 %v520, 1.442695
        %v522 = vpow.pop %v521
        %v523 = vadd.f32 %v522, 1.0
        %v524 = vrcp.pop %v523
        %v525 = vmul.f32 %v523, %v524
        %v526 = vsub.f32 1.0, %v525
        %v527 = vmul.f32 %v524, %v526
        %v528 = vadd.f32 %v524, %v527
        %vm529 = vweird.f32 %v523
        %vm530 = vweird.f32 %v524
        %vm531 = vmor %vm529, %vm530
        %v532 = vsel %vm531, %v524, %v528
        %v533 = vand.u32 2147483647, %v523
        %vm534 = vcmp.eq.f32.partialorder %v533, 8.507059e+37
        %v535 = vand.u32 %v523, 2147483648
        %v536 = vor.u32 1.1754944e-38, %v535
        %v537 = vsel %vm534, %v536, %v532
        %v538 = vmul.f32 1.0, %v537
        %539 = vst [vmem:[%s272] sm:$0x1] %v538
        %s540 = sand.u32 %s182, 1
        %s541 = scalar_lea.sflag [#allocation4], %s540
        %s542 = sand.u32 %s182, 1
        %s543 = scalar_lea.vmem [#allocation3], %s542
        // Predicated region
        $region49: #{tpu_custom_call.1} parent=47 // pred_check
          %p544 = pneg %p192
        $region50: #{tpu_custom_call.1} parent=47 // pred_check_branch
          %546 = sbr.rel (%p544) target = $region52
        $region51: #{tpu_custom_call.1} parent=47 // pred_region
          %548 = vsyncadd %s541, 0
          %s549 = scalar_lea.hbm %s7, %s22
          %s551 = sshll.u32 %s543, 4
          %s552 = int_to_ptr.vmem [resolvable:$true] %s551
          %s553 = sshll.u32 %s549, 4
          %s554 = int_to_ptr.hbm [resolvable:$true] %s553
          %556 = dma.vmem_to_hbm [thread:$0]  %s552, 16, %s554, %s541
        $region52: #{tpu_custom_call.1} parent=47 // pred_fallthru
          _
      $region48: #{tpu_custom_call.1} parent=5 // pred_fallthru
        _
      %p557 = scmp.le.s32.totalorder 2, %s17
      // Predicated region
      $region53: #{tpu_custom_call.1} parent=5 // pred_check
        %p558 = pneg %p557
      $region54: #{tpu_custom_call.1} parent=5 // pred_check_branch
        %560 = sbr.rel (%p558) target = $region56
      $region55: #{tpu_custom_call.1} parent=5 // pred_region
        %s561 = ssub.s32 %s17, 2
        // Predicated region
        $region57: #{tpu_custom_call.1} parent=55 // pred_check
          %p562 = pneg %p198
        $region58: #{tpu_custom_call.1} parent=55 // pred_check_branch
          %564 = sbr.rel (%p562) target = $region60
        $region59: #{tpu_custom_call.1} parent=55 // pred_region
          %s565 = sand.u32 %s183, 1
          %s566 = scalar_lea.sflag [#allocation4], %s565
          %s567 = sand.u32 %s183, 1
          %s568 = scalar_lea.vmem [#allocation3], %s567
          %570 = dma.done %s566, 16
        $region60: #{tpu_custom_call.1} parent=55 // pred_fallthru
          _
      $region56: #{tpu_custom_call.1} parent=5 // pred_fallthru
        _
    $region6: #{tpu_custom_call.1} parent=1 // loop_footer
      %s21 = sadd.s32 1, %s17
    $region7: #{tpu_custom_call.1} parent=1 // loop_footer_branch
      %16 = sbr.rel target = $region3
    $region8: #{tpu_custom_call.1} parent=1 // loop_exit
      _
    %571 = vsyncpa [#allocation4], 1
    %s572 = scalar_lea.sflag [#allocation4], 1
    %573 = vsyncpa %s572, 1

</llo_original>
